<compile_context>
chip_gen: v7x
topology: tpu7x:2x2x1
jax: 0.10.0
libtpu: 0.0.40
codegen_flags: <defaults>
</compile_context>

<pallas_src>
import math
import dataclasses

import numpy as np
import jax
import jax.numpy as jnp
from jax import lax
from jax.experimental import pallas as pl
from jax.experimental.pallas import tpu as pltpu


# ----------------------------------------------------------------------------
# Config mirroring the relevant PPOConfig fields
# ----------------------------------------------------------------------------
@dataclasses.dataclass
class HGTConfig:
    hidden_channels: int = 32
    out_channels: int = 4      # unused by forward (output_proj not called)
    num_heads: int = 2
    num_layers: int = 1
    dropout: float = 0.1       # identity in eval mode


_SQRT1_2 = 0.7071067811865476
_NEG_BIG = 1e30


# ----------------------------------------------------------------------------
# In-kernel math helpers
# ----------------------------------------------------------------------------
def _erf_f32(x):
    # Abramowitz & Stegun 7.1.26 (abs err ~1.5e-7) so exact (erf) GELU lowers on Mosaic.
    a1, a2, a3, a4, a5 = 0.254829592, -0.284496736, 1.421413741, -1.453152027, 1.061405429
    p = 0.3275911
    ax = jnp.abs(x)
    t = 1.0 / (1.0 + p * ax)
    poly = ((((a5 * t + a4) * t + a3) * t + a2) * t + a1) * t
    y = 1.0 - poly * jnp.exp(-ax * ax)
    return jnp.where(x >= 0, y, -y)


def _gelu_exact(x):
    return 0.5 * x * (1.0 + _erf_f32(x * _SQRT1_2))


def _layer_norm(y, g, b, eps=1e-5):
    mu = jnp.mean(y, axis=-1, keepdims=True)
    var = jnp.mean((y - mu) ** 2, axis=-1, keepdims=True)
    return (y - mu) * lax.rsqrt(var + eps) * g + b


# ----------------------------------------------------------------------------
# Kernels
# ----------------------------------------------------------------------------
def _make_prologue_kernel(C):
    """Fused input Linear + LayerNorm + ReLU + layer-0 kqv Linear; grid = node type."""
    def kernel(x_ref, w_ref, b_ref, g_ref, beta_ref, kw_ref, kb_ref,
               h_ref, k_ref, q_ref, v_ref):
        h = jnp.dot(x_ref[0], w_ref[0], preferred_element_type=jnp.float32) + b_ref[0]
        h = jnp.maximum(_layer_norm(h, g_ref[0], beta_ref[0]), 0.0)
        h_ref[0] = h
        kqv = jnp.dot(h, kw_ref[0], preferred_element_type=jnp.float32) + kb_ref[0]
        k_ref[0] = kqv[:, :C]
        q_ref[0] = kqv[:, C:2 * C]
        v_ref[0] = kqv[:, 2 * C:]
    return kernel


def _make_kqv_kernel(C):
    """kqv Linear for all node types (pre-pass of layers > 0); grid = node type."""
    def kernel(h_ref, kw_ref, kb_ref, k_ref, q_ref, v_ref):
        kqv = jnp.dot(h_ref[0], kw_ref[0], preferred_element_type=jnp.float32) + kb_ref[0]
        k_ref[0] = kqv[:, :C]
        q_ref[0] = kqv[:, C:2 * C]
        v_ref[0] = kqv[:, 2 * C:]
    return kernel


def _make_hgt_layer_kernel(E, H, D, C, N):
    """One HGT layer for one destination node type (grid axis = dst node type).

    Ref shapes (blocks):
      src_idx_ref : SMEM (T, E) int32   source node-type index per incoming slot
      q_ref       : (1, N, C)           Q of the dst node type (pipelined)
      k_ref,v_ref : (T, N, C)           K/V of ALL node types (resident, constant index)
      hin_ref     : (1, N, C)           layer input of the dst node type (residual)
      mask_ref    : (1, N, E*N) int8    0/1 adjacency slab of this dst type
      wk_ref      : (1, E, C, C)        block-diag W_k with p_rel/sqrt(D) folded in
      wv_ref      : (1, E, C, C)        block-diag W_v
      wout_ref    : (1, C, C)           output Linear, pre-scaled by sigmoid(skip)
      bout_ref    : (1, 1, C)
      gate_ref    : (1, 1, C)           (2 - sigmoid(skip)) gate (skip + residual)
      lng/lnb_ref : (1, C)              outer LayerNorm gamma/beta
      o_ref       : (1, N, C)
    Scratch: kp/vp (E*N, C) f32, msg (N, C) f32 — replaces in-kernel concatenates.
    """
    def kernel(src_idx_ref, q_ref, k_ref, v_ref, hin_ref, mask_ref,
               wk_ref, wv_ref, wout_ref, bout_ref, gate_ref, lng_ref, lnb_ref,
               o_ref, kp_scr, vp_scr, msg_scr):
        t = pl.program_id(0)

        # ---- per incoming edge type: relation matmuls on precomputed K/V slabs ----
        for e in range(E):
            s_idx = src_idx_ref[t, e]
            kp_scr[e * N:(e + 1) * N, :] = jnp.dot(
                k_ref[s_idx], wk_ref[0, e], preferred_element_type=jnp.float32)
            vp_scr[e * N:(e + 1) * N, :] = jnp.dot(
                v_ref[s_idx], wv_ref[0, e], preferred_element_type=jnp.float32)

        q = q_ref[0]                                               # (N, C)
        kp = kp_scr[...]                                           # (E*N, C)
        vp = vp_scr[...]                                           # (E*N, C)

        maskf = mask_ref[0].astype(jnp.float32)                    # (N, E*N)
        bias = (maskf - 1.0) * _NEG_BIG                            # 0 on edges, -1e30 else
        row_has_edge = jnp.max(maskf, axis=-1, keepdims=True)      # (N, 1) isolated-row gate

        # ---- per-head masked softmax over every incoming edge of each dst node ----
        for hd in range(H):
            qh = q[:, hd * D:(hd + 1) * D]                         # (N, D)
            kph = kp[:, hd * D:(hd + 1) * D]                       # (E*N, D)
            s = lax.dot_general(qh, kph, (((1,), (1,)), ((), ())),
                                preferred_element_type=jnp.float32) + bias   # (N, E*N)
            p = jnp.exp(s - jnp.max(s, axis=-1, keepdims=True))    # masked lanes -> exactly 0
            denom = jnp.sum(p, axis=-1, keepdims=True)             # >= 1, never 0
            oh = jnp.dot(p, vp[:, hd * D:(hd + 1) * D],
                         preferred_element_type=jnp.float32)        # (N, D)
            # normalize AFTER the PV matmul: (N, D) scale on the EUP reciprocal slot
            msg_scr[:, hd * D:(hd + 1) * D] = oh * (
                pl.reciprocal(denom, approx=True) * row_has_edge)

        # ---- GELU -> output Linear (alpha folded) -> skip gate + residual -> LN ----
        xin = hin_ref[0]                                            # (N, C)
        a = jnp.dot(_gelu_exact(msg_scr[...]), wout_ref[0],
                    preferred_element_type=jnp.float32) + bout_ref[0]
        y = a + xin * gate_ref[0]            # = alpha*a_lin + (2 - alpha) * xin
        o_ref[0] = _layer_norm(y, lng_ref[...], lnb_ref[...])

    return kernel


# ----------------------------------------------------------------------------
# Pallas-call wrappers
# ----------------------------------------------------------------------------
def _prologue(x_stack, in_w, in_b, in_g, in_beta, kqv_w, kqv_b):
    T, N, F = x_stack.shape
    C = in_w.shape[-1]
    grid_spec = pltpu.PrefetchScalarGridSpec(
        num_scalar_prefetch=0,
        grid=(T,),
        in_specs=[
            pl.BlockSpec((1, N, F), lambda t: (t, 0, 0)),
            pl.BlockSpec((1, F, C), lambda t: (t, 0, 0)),
            pl.BlockSpec((1, 1, C), lambda t: (t, 0, 0)),
            pl.BlockSpec((1, 1, C), lambda t: (t, 0, 0)),
            pl.BlockSpec((1, 1, C), lambda t: (t, 0, 0)),
            pl.BlockSpec((1, C, 3 * C), lambda t: (t, 0, 0)),
            pl.BlockSpec((1, 1, 3 * C), lambda t: (t, 0, 0)),
        ],
        out_specs=[
            pl.BlockSpec((1, N, C), lambda t: (t, 0, 0)),
            pl.BlockSpec((1, N, C), lambda t: (t, 0, 0)),
            pl.BlockSpec((1, N, C), lambda t: (t, 0, 0)),
            pl.BlockSpec((1, N, C), lambda t: (t, 0, 0)),
        ],
    )
    return pl.pallas_call(
        _make_prologue_kernel(C),
        out_shape=[jax.ShapeDtypeStruct((T, N, C), jnp.float32)] * 4,
        grid_spec=grid_spec,
        compiler_params=pltpu.CompilerParams(dimension_semantics=("parallel",)),
    )(x_stack, in_w, in_b, in_g, in_beta, kqv_w, kqv_b)


def _kqv_prepass(h, kqv_w, kqv_b):
    T, N, C = h.shape
    grid_spec = pltpu.PrefetchScalarGridSpec(
        num_scalar_prefetch=0,
        grid=(T,),
        in_specs=[
            pl.BlockSpec((1, N, C), lambda t: (t, 0, 0)),
            pl.BlockSpec((1, C, 3 * C), lambda t: (t, 0, 0)),
            pl.BlockSpec((1, 1, 3 * C), lambda t: (t, 0, 0)),
        ],
        out_specs=[pl.BlockSpec((1, N, C), lambda t: (t, 0, 0))] * 3,
    )
    return pl.pallas_call(
        _make_kqv_kernel(C),
        out_shape=[jax.ShapeDtypeStruct((T, N, C), jnp.float32)] * 3,
        grid_spec=grid_spec,
        compiler_params=pltpu.CompilerParams(dimension_semantics=("parallel",)),
    )(h, kqv_w, kqv_b)


def _hgt_layer(h, k, q, v, masks_i8, lp, E, H, D, vmem_limit):
    T, N, C = h.shape
    kernel = _make_hgt_layer_kernel(E, H, D, C, N)
    grid_spec = pltpu.PrefetchScalarGridSpec(
        num_scalar_prefetch=1,                                        # src_idx -> SMEM
        grid=(T,),
        in_specs=[
            pl.BlockSpec((1, N, C), lambda t, si: (t, 0, 0)),         # Q of dst type t
            pl.BlockSpec((T, N, C), lambda t, si: (0, 0, 0)),         # K all types (resident)
            pl.BlockSpec((T, N, C), lambda t, si: (0, 0, 0)),         # V all types (resident)
            pl.BlockSpec((1, N, C), lambda t, si: (t, 0, 0)),         # layer input (residual)
            pl.BlockSpec((1, N, E * N), lambda t, si: (t, 0, 0)),     # int8 adjacency slab
            pl.BlockSpec((1, E, C, C), lambda t, si: (t, 0, 0, 0)),   # W_k block-diag
            pl.BlockSpec((1, E, C, C), lambda t, si: (t, 0, 0, 0)),   # W_v block-diag
            pl.BlockSpec((1, C, C), lambda t, si: (t, 0, 0)),         # out weight (alpha folded)
            pl.BlockSpec((1, 1, C), lambda t, si: (t, 0, 0)),         # out bias (alpha folded)
            pl.BlockSpec((1, 1, C), lambda t, si: (t, 0, 0)),         # (2 - alpha) gate
            pl.BlockSpec((1, C), lambda t, si: (0, 0)),               # outer LN gamma
            pl.BlockSpec((1, C), lambda t, si: (0, 0)),               # outer LN beta
        ],
        out_specs=pl.BlockSpec((1, N, C), lambda t, si: (t, 0, 0)),
        scratch_shapes=[
            pltpu.VMEM((E * N, C), jnp.float32),                      # K' slab
            pltpu.VMEM((E * N, C), jnp.float32),                      # V' slab
            pltpu.VMEM((N, C), jnp.float32),                          # per-head messages
        ],
    )
    return pl.pallas_call(
        kernel,
        out_shape=jax.ShapeDtypeStruct((T, N, C), jnp.float32),
        grid_spec=grid_spec,
        compiler_params=pltpu.CompilerParams(
            dimension_semantics=("parallel",),
            vmem_limit_bytes=vmem_limit),
    )(lp["src_idx"], q, k, v, h, masks_i8, lp["wk_bd"], lp["wv_bd"],
      lp["out_w"], lp["out_b"], lp["gate_x"], lp["ln_g"], lp["ln_b"])


# ----------------------------------------------------------------------------
# Parameter init + model
# ----------------------------------------------------------------------------
def _xavier(key, shape):
    fan_in, fan_out = shape[-2], shape[-1]
    lim = math.sqrt(6.0 / (fan_in + fan_out))
    return jax.random.uniform(key, shape, jnp.float32, -lim, lim)


class ImprovedHGTPallas:
    def __init__(self, config: HGTConfig, metadata, node_feature_dims, key):
        self.config = config
        self.node_types, self.edge_types = metadata
        assert config.num_layers >= 1
        T = len(self.node_types)
        C = config.hidden_channels
        H = config.num_heads
        assert C % H == 0
        D = C // H
        self.C, self.H, self.D = C, H, D
        self.type_index = {nt: i for i, nt in enumerate(self.node_types)}
        self.incoming = {nt: [et for et in self.edge_types if et[2] == nt]
                         for nt in self.node_types}
        self.E_max = max(1, max(len(v) for v in self.incoming.values()))
        self.F_max = max(node_feature_dims[nt] for nt in self.node_types)

        n_keys = T + config.num_layers * (2 * T + 2 * len(self.edge_types)) + 1
        keys = iter(jax.random.split(key, n_keys))

        # --- input projection parameters, packed (T, ...) with zero-padded feature dims ---
        in_w = np.zeros((T, self.F_max, C), np.float32)
        for nt in self.node_types:
            f = node_feature_dims[nt]
            in_w[self.type_index[nt], :f, :] = np.asarray(_xavier(next(keys), (f, C)))
        self.in_w = jnp.asarray(in_w)
        self.in_b = jnp.zeros((T, 1, C), jnp.float32)
        self.in_ln_g = jnp.ones((T, 1, C), jnp.float32)
        self.in_ln_b = jnp.zeros((T, 1, C), jnp.float32)

        # --- HGT layers: pack everything kernel-ready once, host-side ---
        scale = 1.0 / math.sqrt(D)
        self.layers = []
        for _ in range(config.num_layers):
            kqv_w = jnp.stack([_xavier(next(keys), (C, 3 * C)) for _ in range(T)], axis=0)
            kqv_b = jnp.zeros((T, 1, 3 * C), jnp.float32)
            wk = {et: np.asarray(_xavier(next(keys), (H, D, D))) for et in self.edge_types}
            wv = {et: np.asarray(_xavier(next(keys), (H, D, D))) for et in self.edge_types}
            p_rel = {et: np.ones((H,), np.float32) for et in self.edge_types}
            out_w = np.stack([np.asarray(_xavier(next(keys), (C, C))) for _ in range(T)], 0)
            out_b = np.zeros((T, 1, C), np.float32)
            skip = np.ones((T,), np.float32)

            # block-diagonal relation matrices per (dst type, incoming slot);
            # p_rel/sqrt(D) folded into W_k; padded slots stay zero (mask kills them too).
            wk_bd = np.zeros((T, self.E_max, C, C), np.float32)
            wv_bd = np.zeros((T, self.E_max, C, C), np.float32)
            src_idx = np.zeros((T, self.E_max), np.int32)
            for nt in self.node_types:
                ti = self.type_index[nt]
                for e, et in enumerate(self.incoming[nt]):
                    src_idx[ti, e] = self.type_index[et[0]]
                    for hh in range(H):
                        sl = slice(hh * D, (hh + 1) * D)
                        wk_bd[ti, e, sl, sl] = wk[et][hh] * (p_rel[et][hh] * scale)
                        wv_bd[ti, e, sl, sl] = wv[et][hh]

            alpha = 1.0 / (1.0 + np.exp(-skip))                 # sigmoid(skip), eval mode
            gate_x = np.broadcast_to((2.0 - alpha)[:, None, None], (T, 1, C)).copy()
            out_w = out_w * alpha[:, None, None]                # fold alpha into out Linear
            out_b = out_b * alpha[:, None, None]

            self.layers.append({
                "src_idx": jnp.asarray(src_idx),
                "kqv_w": kqv_w, "kqv_b": kqv_b,
                "wk_bd": jnp.asarray(wk_bd), "wv_bd": jnp.asarray(wv_bd),
                "out_w": jnp.asarray(out_w), "out_b": jnp.asarray(out_b),
                "gate_x": jnp.asarray(gate_x),
                "ln_g": jnp.ones((1, C), jnp.float32),
                "ln_b": jnp.zeros((1, C), jnp.float32),
            })
        # NOTE: output_proj parameters of the torch module are never used in forward().

    # Dense 0/1 adjacency slabs, built host-side with ONE numpy fancy-index pass and a
    # single device transfer, shipped as int8 (T, N, E_max*N).  Cache if graph is static.
    def build_masks(self, edge_index_dict, n_pad):
        T = len(self.node_types)
        m = np.zeros((T, n_pad, self.E_max * n_pad), np.int8)
        for nt in self.node_types:
            ti = self.type_index[nt]
            for e, et in enumerate(self.incoming[nt]):
                ei = edge_index_dict.get(et)
                if ei is None:
                    continue
                ei = np.asarray(ei)
                if ei.size == 0 or ei.shape[1] == 0:
                    continue
                src = ei[0].astype(np.int64)      # PyG convention: row0 = src, row1 = dst
                dst = ei[1].astype(np.int64)
                m[ti, dst, e * n_pad + src] = 1
        return jnp.asarray(m)

    def _vmem_limit(self, n_pad):
        T, C, E = len(self.node_types), self.C, self.E_max
        f32 = 4
        resident = 2 * (T * n_pad * C * f32)                            # K, V slabs
        per_step = (3 * n_pad * C * f32                                  # Q, h_in, out block
                    + n_pad * E * n_pad                                  # int8 mask slab
                    + (2 * E * C * C + C * C + 5 * C) * f32)             # weights/biases
        scratch = (2 * E * n_pad * C + n_pad * C) * f32
        est = resident + 2 * per_step + scratch                          # 2x: double-buffered
        return int(min(max(4 * est, 16 * 2 ** 20), 64 * 2 ** 20))        # cap: v7x physical

    def __call__(self, x_dict, edge_index_dict, masks=None):
        num_nodes = {nt: x_dict[nt].shape[0] for nt in self.node_types}
        n_pad = max(8, -(-max(num_nodes.values()) // 8) * 8)   # pad nodes to sublane multiple

        # Pad & stack node features -> (T, N_pad, F_max); zero-padded rows/cols are inert.
        x_stack = jnp.stack([
            jnp.pad(x_dict[nt].astype(jnp.float32),
                    ((0, n_pad - num_nodes[nt]), (0, self.F_max - x_dict[nt].shape[1])))
            for nt in self.node_types], axis=0)

        if masks is None:
            masks = self.build_masks(edge_index_dict, n_pad)
        vmem_limit = self._vmem_limit(n_pad)

        # Layer-0 prologue: fused input Linear+LN+ReLU and layer-0 kqv projection.
        lp0 = self.layers[0]
        h, k, q, v = _prologue(x_stack, self.in_w, self.in_b, self.in_ln_g, self.in_ln_b,
                               lp0["kqv_w"], lp0["kqv_b"])
        # One pallas_call per layer: relation matmuls + masked softmax + GELU + out Linear
        # + skip gate + residual + LayerNorm.  kqv of deeper layers via a tiny pre-pass.
        for li, lp in enumerate(self.layers):
            if li > 0:
                k, q, v = _kqv_prepass(h, lp["kqv_w"], lp["kqv_b"])
            h = _hgt_layer(h, k, q, v, masks, lp, self.E_max, self.H, self.D, vmem_limit)

        return {nt: h[self.type_index[nt], :num_nodes[nt], :] for nt in self.node_types}


# ----------------------------------------------------------------------------
# Demo
# ----------------------------------------------------------------------------
if __name__ == "__main__":
    config = HGTConfig(hidden_channels=32, num_heads=2, num_layers=1)
    metadata = (
        ["agent", "task"],
        [("agent", "to", "task"), ("task", "to", "agent"), ("agent", "to", "agent")],
    )
    node_feature_dims = {"agent": 12, "task": 8}
    num_nodes = {"agent": 16, "task": 16}

    key = jax.random.PRNGKey(0)
    k_model, k_xa, k_xt, k_e1, k_e2, k_e3 = jax.random.split(key, 6)

    x_dict = {
        "agent": jax.random.normal(k_xa, (num_nodes["agent"], node_feature_dims["agent"]),
                                   jnp.float32),
        "task": jax.random.normal(k_xt, (num_nodes["task"], node_feature_dims["task"]),
                                  jnp.float32),
    }

    def make_edges(k, n_src, n_dst, prob=0.3):
        dense = np.asarray(jax.random.bernoulli(k, prob, (n_dst, n_src)))
        dst, src = np.nonzero(dense)
        return jnp.asarray(np.stack([src, dst], axis=0), dtype=jnp.int32)

    edge_index_dict = {
        ("agent", "to", "task"): make_edges(k_e1, num_nodes["agent"], num_nodes["task"]),
        ("task", "to", "agent"): make_edges(k_e2, num_nodes["task"], num_nodes["agent"]),
        ("agent", "to", "agent"): make_edges(k_e3, num_nodes["agent"], num_nodes["agent"]),
    }

    model = ImprovedHGTPallas(config, metadata, node_feature_dims, k_model)
    out = model(x_dict, edge_index_dict)
    out = jax.block_until_ready(out)

    for nt in metadata[0]:
        assert out[nt].shape == (num_nodes[nt], config.hidden_channels)
        assert bool(jnp.all(jnp.isfinite(out[nt])))
    print("KERNEL_OK")
</pallas_src>

<mosaic_0001>
module attributes {stable_mosaic.version = 11 : i64} {
  func.func @kernel(%arg0: i32, %arg1: memref<1x16x12xf32, #tpu.memory_space<vmem>>, %arg2: memref<1x12x32xf32, #tpu.memory_space<vmem>>, %arg3: memref<1x1x32xf32, #tpu.memory_space<vmem>>, %arg4: memref<1x1x32xf32, #tpu.memory_space<vmem>>, %arg5: memref<1x1x32xf32, #tpu.memory_space<vmem>>, %arg6: memref<1x32x96xf32, #tpu.memory_space<vmem>>, %arg7: memref<1x1x96xf32, #tpu.memory_space<vmem>>, %arg8: memref<1x16x32xf32, #tpu.memory_space<vmem>>, %arg9: memref<1x16x32xf32, #tpu.memory_space<vmem>>, %arg10: memref<1x16x32xf32, #tpu.memory_space<vmem>>, %arg11: memref<1x16x32xf32, #tpu.memory_space<vmem>>) attributes {dimension_semantics = [#tpu.dimension_semantics<parallel>], iteration_bounds = array<i64: 2>, scalar_prefetch = 0 : i64, scratch_operands = 0 : i64, tpu.core_type = #tpu.core_type<tc>, window_params = [{transform_indices = @transform_0, window_bounds = array<i64: 1, 16, 12>}, {transform_indices = @transform_1, window_bounds = array<i64: 1, 12, 32>}, {transform_indices = @transform_2, window_bounds = array<i64: 1, 1, 32>}, {transform_indices = @transform_3, window_bounds = array<i64: 1, 1, 32>}, {transform_indices = @transform_4, window_bounds = array<i64: 1, 1, 32>}, {transform_indices = @transform_5, window_bounds = array<i64: 1, 32, 96>}, {transform_indices = @transform_6, window_bounds = array<i64: 1, 1, 96>}, {transform_indices = @transform_7, window_bounds = array<i64: 1, 16, 32>}, {transform_indices = @transform_8, window_bounds = array<i64: 1, 16, 32>}, {transform_indices = @transform_9, window_bounds = array<i64: 1, 16, 32>}, {transform_indices = @transform_10, window_bounds = array<i64: 1, 16, 32>}]} {
    %c0 = arith.constant 0 : index
    %c0_0 = arith.constant 0 : index
    %c0_1 = arith.constant 0 : index
    %0 = vector.load %arg1[%c0, %c0_0, %c0_1] : memref<1x16x12xf32, #tpu.memory_space<vmem>>, vector<1x16x12xf32>
    %1 = vector.shape_cast %0 : vector<1x16x12xf32> to vector<16x12xf32>
    %c0_2 = arith.constant 0 : index
    %c0_3 = arith.constant 0 : index
    %c0_4 = arith.constant 0 : index
    %2 = vector.load %arg2[%c0_2, %c0_3, %c0_4] : memref<1x12x32xf32, #tpu.memory_space<vmem>>, vector<1x12x32xf32>
    %3 = vector.shape_cast %2 : vector<1x12x32xf32> to vector<12x32xf32>
    %cst = arith.constant dense<0.000000e+00> : vector<16x32xf32>
    %4 = tpu.matmul %1, %3, %cst {dimension_numbers = #tpu.dot_dimension_numbers<[1], [0], [0], [1], [0, 0, 1, 1], [], []>} : vector<16x12xf32>, vector<12x32xf32>, vector<16x32xf32> -> vector<16x32xf32>
    %c0_5 = arith.constant 0 : index
    %c0_6 = arith.constant 0 : index
    %c0_7 = arith.constant 0 : index
    %5 = vector.load %arg3[%c0_5, %c0_6, %c0_7] : memref<1x1x32xf32, #tpu.memory_space<vmem>>, vector<1x1x32xf32>
    %6 = vector.shape_cast %5 : vector<1x1x32xf32> to vector<1x32xf32>
    %7 = vector.broadcast %6 : vector<1x32xf32> to vector<16x32xf32>
    %8 = arith.addf %4, %7 : vector<16x32xf32>
    %c0_8 = arith.constant 0 : index
    %c0_9 = arith.constant 0 : index
    %c0_10 = arith.constant 0 : index
    %9 = vector.load %arg4[%c0_8, %c0_9, %c0_10] : memref<1x1x32xf32, #tpu.memory_space<vmem>>, vector<1x1x32xf32>
    %10 = vector.shape_cast %9 : vector<1x1x32xf32> to vector<1x32xf32>
    %c0_11 = arith.constant 0 : index
    %c0_12 = arith.constant 0 : index
    %c0_13 = arith.constant 0 : index
    %11 = vector.load %arg5[%c0_11, %c0_12, %c0_13] : memref<1x1x32xf32, #tpu.memory_space<vmem>>, vector<1x1x32xf32>
    %12 = vector.shape_cast %11 : vector<1x1x32xf32> to vector<1x32xf32>
    %cst_14 = arith.constant dense<0.000000e+00> : vector<16xf32>
    %13 = vector.multi_reduction <add>, %8, %cst_14 [1] : vector<16x32xf32> to vector<16xf32>
    %14 = vector.shape_cast %13 : vector<16xf32> to vector<16x1xf32>
    %cst_15 = arith.constant 3.200000e+01 : f32
    %15 = vector.broadcast %cst_15 : f32 to vector<16x1xf32>
    %16 = arith.divf %14, %15 : vector<16x1xf32>
    %17 = vector.broadcast %16 : vector<16x1xf32> to vector<16x32xf32>
    %18 = arith.subf %8, %17 : vector<16x32xf32>
    %19 = arith.mulf %18, %18 : vector<16x32xf32>
    %cst_16 = arith.constant dense<0.000000e+00> : vector<16xf32>
    %20 = vector.multi_reduction <add>, %19, %cst_16 [1] : vector<16x32xf32> to vector<16xf32>
    %21 = vector.shape_cast %20 : vector<16xf32> to vector<16x1xf32>
    %cst_17 = arith.constant 3.200000e+01 : f32
    %22 = vector.broadcast %cst_17 : f32 to vector<16x1xf32>
    %23 = arith.divf %21, %22 : vector<16x1xf32>
    %24 = vector.broadcast %16 : vector<16x1xf32> to vector<16x32xf32>
    %25 = arith.subf %8, %24 : vector<16x32xf32>
    %cst_18 = arith.constant 9.99999974E-6 : f32
    %26 = vector.broadcast %cst_18 : f32 to vector<16x1xf32>
    %27 = arith.addf %23, %26 : vector<16x1xf32>
    %28 = math.rsqrt %27 : vector<16x1xf32>
    %29 = vector.broadcast %28 : vector<16x1xf32> to vector<16x32xf32>
    %30 = arith.mulf %25, %29 : vector<16x32xf32>
    %31 = vector.broadcast %10 : vector<1x32xf32> to vector<16x32xf32>
    %32 = arith.mulf %30, %31 : vector<16x32xf32>
    %33 = vector.broadcast %12 : vector<1x32xf32> to vector<16x32xf32>
    %34 = arith.addf %32, %33 : vector<16x32xf32>
    %cst_19 = arith.constant 0.000000e+00 : f32
    %35 = vector.broadcast %cst_19 : f32 to vector<16x32xf32>
    %36 = arith.maximumf %34, %35 : vector<16x32xf32>
    %c0_20 = arith.constant 0 : index
    %c0_21 = arith.constant 0 : index
    %c0_22 = arith.constant 0 : index
    %37 = vector.load %arg8[%c0_20, %c0_21, %c0_22] : memref<1x16x32xf32, #tpu.memory_space<vmem>>, vector<1x16x32xf32>
    %38 = vector.shape_cast %37 : vector<1x16x32xf32> to vector<16x32xf32>
    %39 = vector.shape_cast %36 : vector<16x32xf32> to vector<1x16x32xf32>
    tpu.vector_store %arg8[%c0_20, %c0_21, %c0_22], %39 {strides = array<i32>} : memref<1x16x32xf32, #tpu.memory_space<vmem>>, vector<1x16x32xf32>,
    %c0_23 = arith.constant 0 : index
    %c0_24 = arith.constant 0 : index
    %c0_25 = arith.constant 0 : index
    %40 = vector.load %arg6[%c0_23, %c0_24, %c0_25] : memref<1x32x96xf32, #tpu.memory_space<vmem>>, vector<1x32x96xf32>
    %41 = vector.shape_cast %40 : vector<1x32x96xf32> to vector<32x96xf32>
    %cst_26 = arith.constant dense<0.000000e+00> : vector<16x96xf32>
    %42 = tpu.matmul %36, %41, %cst_26 {dimension_numbers = #tpu.dot_dimension_numbers<[1], [0], [0], [1], [0, 0, 1, 1], [], []>} : vector<16x32xf32>, vector<32x96xf32>, vector<16x96xf32> -> vector<16x96xf32>
    %c0_27 = arith.constant 0 : index
    %c0_28 = arith.constant 0 : index
    %c0_29 = arith.constant 0 : index
    %43 = vector.load %arg7[%c0_27, %c0_28, %c0_29] : memref<1x1x96xf32, #tpu.memory_space<vmem>>, vector<1x1x96xf32>
    %44 = vector.shape_cast %43 : vector<1x1x96xf32> to vector<1x96xf32>
    %45 = vector.broadcast %44 : vector<1x96xf32> to vector<16x96xf32>
    %46 = arith.addf %42, %45 : vector<16x96xf32>
    %47 = vector.extract_strided_slice %46 {offsets = [0, 0], sizes = [16, 32], strides = [1, 1]} : vector<16x96xf32> to vector<16x32xf32>
    %c0_30 = arith.constant 0 : index
    %c0_31 = arith.constant 0 : index
    %c0_32 = arith.constant 0 : index
    %48 = vector.load %arg9[%c0_30, %c0_31, %c0_32] : memref<1x16x32xf32, #tpu.memory_space<vmem>>, vector<1x16x32xf32>
    %49 = vector.shape_cast %48 : vector<1x16x32xf32> to vector<16x32xf32>
    %50 = vector.shape_cast %47 : vector<16x32xf32> to vector<1x16x32xf32>
    tpu.vector_store %arg9[%c0_30, %c0_31, %c0_32], %50 {strides = array<i32>} : memref<1x16x32xf32, #tpu.memory_space<vmem>>, vector<1x16x32xf32>,
    %51 = vector.extract_strided_slice %46 {offsets = [0, 32], sizes = [16, 32], strides = [1, 1]} : vector<16x96xf32> to vector<16x32xf32>
    %c0_33 = arith.constant 0 : index
    %c0_34 = arith.constant 0 : index
    %c0_35 = arith.constant 0 : index
    %52 = vector.load %arg10[%c0_33, %c0_34, %c0_35] : memref<1x16x32xf32, #tpu.memory_space<vmem>>, vector<1x16x32xf32>
    %53 = vector.shape_cast %52 : vector<1x16x32xf32> to vector<16x32xf32>
    %54 = vector.shape_cast %51 : vector<16x32xf32> to vector<1x16x32xf32>
    tpu.vector_store %arg10[%c0_33, %c0_34, %c0_35], %54 {strides = array<i32>} : memref<1x16x32xf32, #tpu.memory_space<vmem>>, vector<1x16x32xf32>,
    %55 = vector.extract_strided_slice %46 {offsets = [0, 64], sizes = [16, 32], strides = [1, 1]} : vector<16x96xf32> to vector<16x32xf32>
    %c0_36 = arith.constant 0 : index
    %c0_37 = arith.constant 0 : index
    %c0_38 = arith.constant 0 : index
    %56 = vector.load %arg11[%c0_36, %c0_37, %c0_38] : memref<1x16x32xf32, #tpu.memory_space<vmem>>, vector<1x16x32xf32>
    %57 = vector.shape_cast %56 : vector<1x16x32xf32> to vector<16x32xf32>
    %58 = vector.shape_cast %55 : vector<16x32xf32> to vector<1x16x32xf32>
    tpu.vector_store %arg11[%c0_36, %c0_37, %c0_38], %58 {strides = array<i32>} : memref<1x16x32xf32, #tpu.memory_space<vmem>>, vector<1x16x32xf32>,
    return
  }
  func.func @transform_0(%arg0: i32) -> (i32, i32, i32) {
    %c0_i32 = arith.constant 0 : i32
    %c0_i32_0 = arith.constant 0 : i32
    %c0_i32_1 = arith.constant 0 : i32
    return %arg0, %c0_i32, %c0_i32_0 : i32, i32, i32
  }
  func.func @transform_1(%arg0: i32) -> (i32, i32, i32) {
    %c0_i32 = arith.constant 0 : i32
    %c0_i32_0 = arith.constant 0 : i32
    %c0_i32_1 = arith.constant 0 : i32
    return %arg0, %c0_i32, %c0_i32_0 : i32, i32, i32
  }
  func.func @transform_2(%arg0: i32) -> (i32, i32, i32) {
    %c0_i32 = arith.constant 0 : i32
    %c0_i32_0 = arith.constant 0 : i32
    %c0_i32_1 = arith.constant 0 : i32
    return %arg0, %c0_i32, %c0_i32_0 : i32, i32, i32
  }
  func.func @transform_3(%arg0: i32) -> (i32, i32, i32) {
    %c0_i32 = arith.constant 0 : i32
    %c0_i32_0 = arith.constant 0 : i32
    %c0_i32_1 = arith.constant 0 : i32
    return %arg0, %c0_i32, %c0_i32_0 : i32, i32, i32
  }
  func.func @transform_4(%arg0: i32) -> (i32, i32, i32) {
    %c0_i32 = arith.constant 0 : i32
    %c0_i32_0 = arith.constant 0 : i32
    %c0_i32_1 = arith.constant 0 : i32
    return %arg0, %c0_i32, %c0_i32_0 : i32, i32, i32
  }
  func.func @transform_5(%arg0: i32) -> (i32, i32, i32) {
    %c0_i32 = arith.constant 0 : i32
    %c0_i32_0 = arith.constant 0 : i32
    %c0_i32_1 = arith.constant 0 : i32
    return %arg0, %c0_i32, %c0_i32_0 : i32, i32, i32
  }
  func.func @transform_6(%arg0: i32) -> (i32, i32, i32) {
    %c0_i32 = arith.constant 0 : i32
    %c0_i32_0 = arith.constant 0 : i32
    %c0_i32_1 = arith.constant 0 : i32
    return %arg0, %c0_i32, %c0_i32_0 : i32, i32, i32
  }
  func.func @transform_7(%arg0: i32) -> (i32, i32, i32) {
    %c0_i32 = arith.constant 0 : i32
    %c0_i32_0 = arith.constant 0 : i32
    %c0_i32_1 = arith.constant 0 : i32
    return %arg0, %c0_i32, %c0_i32_0 : i32, i32, i32
  }
  func.func @transform_8(%arg0: i32) -> (i32, i32, i32) {
    %c0_i32 = arith.constant 0 : i32
    %c0_i32_0 = arith.constant 0 : i32
    %c0_i32_1 = arith.constant 0 : i32
    return %arg0, %c0_i32, %c0_i32_0 : i32, i32, i32
  }
  func.func @transform_9(%arg0: i32) -> (i32, i32, i32) {
    %c0_i32 = arith.constant 0 : i32
    %c0_i32_0 = arith.constant 0 : i32
    %c0_i32_1 = arith.constant 0 : i32
    return %arg0, %c0_i32, %c0_i32_0 : i32, i32, i32
  }
  func.func @transform_10(%arg0: i32) -> (i32, i32, i32) {
    %c0_i32 = arith.constant 0 : i32
    %c0_i32_0 = arith.constant 0 : i32
    %c0_i32_1 = arith.constant 0 : i32
    return %arg0, %c0_i32, %c0_i32_0 : i32, i32, i32
  }
}

</mosaic_0001>

<llo_original>
// kernel: tpu_custom_call.1
$region0: #{tpu_custom_call.1}
  #allocation0 [shape = 'u32[]', space=smem, size = 0x4, offset = 0x4, fixed_abs, tag = 'smem constant byte address 0x4 - core index']
  #allocation1 [shape = 'u32[144,128]{1,0:T(1,128)}', space=vmem, size = 0x12000, scoped, tag = 'internal scratch']
  %s0 = inlined_call_operand.vmem [shape: f32[2,16,12], index: 0, kind: input, shape index: {}]
  %s1 = inlined_call_operand.vmem [shape: f32[2,12,32], index: 1, kind: input, shape index: {}]
  %s2 = inlined_call_operand.vmem [shape: f32[2,1,32], index: 2, kind: input, shape index: {}]
  %s3 = inlined_call_operand.vmem [shape: f32[2,1,32], index: 3, kind: input, shape index: {}]
  %s4 = inlined_call_operand.vmem [shape: f32[2,1,32], index: 4, kind: input, shape index: {}]
  %s5 = inlined_call_operand.vmem [shape: f32[2,32,96], index: 5, kind: input, shape index: {}]
  %s6 = inlined_call_operand.vmem [shape: f32[2,1,96], index: 6, kind: input, shape index: {}]
  %s7 = inlined_call_operand.hbm [shape: f32[2,16,32], index: 7, kind: output, shape index: {0}]
  %s8 = inlined_call_operand.hbm [shape: f32[2,16,32], index: 8, kind: output, shape index: {1}]
  %s9 = inlined_call_operand.hbm [shape: f32[2,16,32], index: 9, kind: output, shape index: {2}]
  %s10 = inlined_call_operand.hbm [shape: f32[2,16,32], index: 10, kind: output, shape index: {3}]
  %11 = xla_tuple %s7, %s8, %s9, %s10
  %s12 = sld [smem:[#allocation0]]
  $region85: #{tpu_custom_call.1} parent=0
    _
  %s14 = ssub.s32 1, %s12
  %s15 = scalar_select 0, %s14, %s12
  $region1: #{tpu_custom_call.1} parent=0
    #allocation2 [shape = 'u8[16384]{0}', space=vmem, size = 0x4000, scoped, tag = 'output window, operand 0']
    #allocation3 [shape = 's32[2]{0}', space=sflag, size = 0x8, scoped, tag = 'scoped memory for tpu_custom_call.1']
    #allocation4 [shape = 'u8[16384]{0}', space=vmem, size = 0x4000, scoped, tag = 'output window, operand 1']
    #allocation5 [shape = 's32[2]{0}', space=sflag, size = 0x8, scoped, tag = 'scoped memory for tpu_custom_call.1']
    #allocation6 [shape = 'u8[16384]{0}', space=vmem, size = 0x4000, scoped, tag = 'output window, operand 2']
    #allocation7 [shape = 'u8[16384]{0}', space=vmem, size = 0x4000, scoped, tag = 'output window, operand 3']
    #allocation8 [shape = 's32[2]{0}', space=sflag, size = 0x8, scoped, tag = 'scoped memory for tpu_custom_call.1']
    %16 = vsyncpa [#allocation3], 0
    %s17 = scalar_lea.sflag [#allocation3], 1
    %18 = vsyncpa %s17, 0
    %19 = vsyncpa [#allocation5], 0
    %s20 = scalar_lea.sflag [#allocation5], 1
    %21 = vsyncpa %s20, 0
    %22 = vsyncpa [#allocation8], 0
    %s23 = scalar_lea.sflag [#allocation8], 1
    %24 = vsyncpa %s23, 0
    loop: start=0, step=1, limit=4
    $region2: #{tpu_custom_call.1} parent=1 // loop_pre_header
      _
    $region3: #{tpu_custom_call.1} parent=1 // loop_header
      %s26 = sphi 0, %s30
      %p27 = scmp.ge.s32.totalorder %s26, 4
      %s36 = sphi 0, %s38
      %s39 = sphi 0, %s36
      %s40 = sphi 0, %s39
      %s56 = sphi 0, %s40
      %s62 = sphi 0, %s64
      %s65 = sphi 0, %s62
      %s66 = sphi 0, %s65
      %s82 = sphi 0, %s66
      %s88 = sphi 0, %s90
      %s91 = sphi 0, %s88
      %s92 = sphi 0, %s91
      %s108 = sphi 0, %s92
      %s114 = sphi 0, %s116
      %s117 = sphi 0, %s114
      %s118 = sphi 0, %s117
      %s134 = sphi 0, %s118
      %s140 = sphi 0, %s142
      %s143 = sphi 0, %s140
      %s144 = sphi 0, %s143
      %s160 = sphi 0, %s144
      %s166 = sphi 0, %s168
      %s169 = sphi 0, %s166
      %s170 = sphi 0, %s169
      %s186 = sphi 0, %s170
      %s192 = sphi 0, %s194
      %s195 = sphi 0, %s192
      %s196 = sphi 0, %s195
      %s212 = sphi 0, %s196
      %s218 = sphi 0, %s220
      %s221 = sphi 0, %s218
      %s222 = sphi 0, %s221
      %s238 = sphi 0, %s222
      %s244 = sphi 0, %s246
      %s247 = sphi 0, %s244
      %s248 = sphi 0, %s247
      %s264 = sphi 0, %s248
      %s270 = sphi 0, %s272
      %s273 = sphi 0, %s270
      %s274 = sphi 0, %s273
      %s290 = sphi 0, %s274
      %s296 = sphi 0, %s298
      %s299 = sphi 0, %s296
      %s300 = sphi 0, %s299
      %s316 = sphi 0, %s300
    $region4: #{tpu_custom_call.1} parent=1 // loop_header_branch
      %29 = sbr.rel (%p27) target = $region8
    $region5: #{tpu_custom_call.1} parent=1 // loop_body
      %s31 = ssub.s32 %s26, 1
      %s32 = ssub.s32 %s26, 2
      %s33 = sadd.s32 %s26, 1
      %s34 = ssub.s32 %s26, %s33
      %p35 = scmp.eq.s32.totalorder %s34, 0
      %s37 = sadd.s32 %s36, 1
      %s38 = scalar_select %p35, %s36, %s37
      %p41 = pneg %p35
      %p42 = scmp.eq.s32.totalorder %s26, 1
      %p43 = por %p41, %p42
      %p44 = scmp.ne.s32.totalorder %s36, %s39
      %p45 = scmp.eq.s32.totalorder %s26, 0
      %p46 = por %p44, %p45
      %p47 = scmp.ne.s32.totalorder %s36, %s39
      %p48 = scmp.eq.s32.totalorder %s31, 1
      %p49 = por %p47, %p48
      %p50 = scmp.ne.s32.totalorder %s39, %s40
      %p51 = scmp.eq.s32.totalorder %s31, 0
      %p52 = por %p50, %p51
      %p53 = scmp.ne.s32.totalorder %s39, %s40
      %p54 = scmp.eq.s32.totalorder %s32, 1
      %p55 = por %p53, %p54
      %p57 = scmp.ne.s32.totalorder %s40, %s56
      %p58 = scmp.eq.s32.totalorder %s32, 0
      %p59 = por %p57, %p58
      %s60 = ssub.s32 %s26, %s33
      %p61 = scmp.eq.s32.totalorder %s60, 0
      %s63 = sadd.s32 %s62, 1
      %s64 = scalar_select %p61, %s62, %s63
      %p67 = pneg %p61
      %p68 = scmp.eq.s32.totalorder %s26, 1
      %p69 = por %p67, %p68
      %p70 = scmp.ne.s32.totalorder %s62, %s65
      %p71 = scmp.eq.s32.totalorder %s26, 0
      %p72 = por %p70, %p71
      %p73 = scmp.ne.s32.totalorder %s62, %s65
      %p74 = scmp.eq.s32.totalorder %s31, 1
      %p75 = por %p73, %p74
      %p76 = scmp.ne.s32.totalorder %s65, %s66
      %p77 = scmp.eq.s32.totalorder %s31, 0
      %p78 = por %p76, %p77
      %p79 = scmp.ne.s32.totalorder %s65, %s66
      %p80 = scmp.eq.s32.totalorder %s32, 1
      %p81 = por %p79, %p80
      %p83 = scmp.ne.s32.totalorder %s66, %s82
      %p84 = scmp.eq.s32.totalorder %s32, 0
      %p85 = por %p83, %p84
      %s86 = ssub.s32 %s26, %s33
      %p87 = scmp.eq.s32.totalorder %s86, 0
      %s89 = sadd.s32 %s88, 1
      %s90 = scalar_select %p87, %s88, %s89
      %p93 = pneg %p87
      %p94 = scmp.eq.s32.totalorder %s26, 1
      %p95 = por %p93, %p94
      %p96 = scmp.ne.s32.totalorder %s88, %s91
      %p97 = scmp.eq.s32.totalorder %s26, 0
      %p98 = por %p96, %p97
      %p99 = scmp.ne.s32.totalorder %s88, %s91
      %p100 = scmp.eq.s32.totalorder %s31, 1
      %p101 = por %p99, %p100
      %p102 = scmp.ne.s32.totalorder %s91, %s92
      %p103 = scmp.eq.s32.totalorder %s31, 0
      %p104 = por %p102, %p103
      %p105 = scmp.ne.s32.totalorder %s91, %s92
      %p106 = scmp.eq.s32.totalorder %s32, 1
      %p107 = por %p105, %p106
      %p109 = scmp.ne.s32.totalorder %s92, %s108
      %p110 = scmp.eq.s32.totalorder %s32, 0
      %p111 = por %p109, %p110
      %s112 = ssub.s32 %s26, %s33
      %p113 = scmp.eq.s32.totalorder %s112, 0
      %s115 = sadd.s32 %s114, 1
      %s116 = scalar_select %p113, %s114, %s115
      %p119 = pneg %p113
      %p120 = scmp.eq.s32.totalorder %s26, 1
      %p121 = por %p119, %p120
      %p122 = scmp.ne.s32.totalorder %s114, %s117
      %p123 = scmp.eq.s32.totalorder %s26, 0
      %p124 = por %p122, %p123
      %p125 = scmp.ne.s32.totalorder %s114, %s117
      %p126 = scmp.eq.s32.totalorder %s31, 1
      %p127 = por %p125, %p126
      %p128 = scmp.ne.s32.totalorder %s117, %s118
      %p129 = scmp.eq.s32.totalorder %s31, 0
      %p130 = por %p128, %p129
      %p131 = scmp.ne.s32.totalorder %s117, %s118
      %p132 = scmp.eq.s32.totalorder %s32, 1
      %p133 = por %p131, %p132
      %p135 = scmp.ne.s32.totalorder %s118, %s134
      %p136 = scmp.eq.s32.totalorder %s32, 0
      %p137 = por %p135, %p136
      %s138 = ssub.s32 %s26, %s33
      %p139 = scmp.eq.s32.totalorder %s138, 0
      %s141 = sadd.s32 %s140, 1
      %s142 = scalar_select %p139, %s140, %s141
      %p145 = pneg %p139
      %p146 = scmp.eq.s32.totalorder %s26, 1
      %p147 = por %p145, %p146
      %p148 = scmp.ne.s32.totalorder %s140, %s143
      %p149 = scmp.eq.s32.totalorder %s26, 0
      %p150 = por %p148, %p149
      %p151 = scmp.ne.s32.totalorder %s140, %s143
      %p152 = scmp.eq.s32.totalorder %s31, 1
      %p153 = por %p151, %p152
      %p154 = scmp.ne.s32.totalorder %s143, %s144
      %p155 = scmp.eq.s32.totalorder %s31, 0
      %p156 = por %p154, %p155
      %p157 = scmp.ne.s32.totalorder %s143, %s144
      %p158 = scmp.eq.s32.totalorder %s32, 1
      %p159 = por %p157, %p158
      %p161 = scmp.ne.s32.totalorder %s144, %s160
      %p162 = scmp.eq.s32.totalorder %s32, 0
      %p163 = por %p161, %p162
      %s164 = ssub.s32 %s26, %s33
      %p165 = scmp.eq.s32.totalorder %s164, 0
      %s167 = sadd.s32 %s166, 1
      %s168 = scalar_select %p165, %s166, %s167
      %p171 = pneg %p165
      %p172 = scmp.eq.s32.totalorder %s26, 1
      %p173 = por %p171, %p172
      %p174 = scmp.ne.s32.totalorder %s166, %s169
      %p175 = scmp.eq.s32.totalorder %s26, 0
      %p176 = por %p174, %p175
      %p177 = scmp.ne.s32.totalorder %s166, %s169
      %p178 = scmp.eq.s32.totalorder %s31, 1
      %p179 = por %p177, %p178
      %p180 = scmp.ne.s32.totalorder %s169, %s170
      %p181 = scmp.eq.s32.totalorder %s31, 0
      %p182 = por %p180, %p181
      %p183 = scmp.ne.s32.totalorder %s169, %s170
      %p184 = scmp.eq.s32.totalorder %s32, 1
      %p185 = por %p183, %p184
      %p187 = scmp.ne.s32.totalorder %s170, %s186
      %p188 = scmp.eq.s32.totalorder %s32, 0
      %p189 = por %p187, %p188
      %s190 = ssub.s32 %s26, %s33
      %p191 = scmp.eq.s32.totalorder %s190, 0
      %s193 = sadd.s32 %s192, 1
      %s194 = scalar_select %p191, %s192, %s193
      %p197 = pneg %p191
      %p198 = scmp.eq.s32.totalorder %s26, 1
      %p199 = por %p197, %p198
      %p200 = scmp.ne.s32.totalorder %s192, %s195
      %p201 = scmp.eq.s32.totalorder %s26, 0
      %p202 = por %p200, %p201
      %p203 = scmp.ne.s32.totalorder %s192, %s195
      %p204 = scmp.eq.s32.totalorder %s31, 1
      %p205 = por %p203, %p204
      %p206 = scmp.ne.s32.totalorder %s195, %s196
      %p207 = scmp.eq.s32.totalorder %s31, 0
      %p208 = por %p206, %p207
      %p209 = scmp.ne.s32.totalorder %s195, %s196
      %p210 = scmp.eq.s32.totalorder %s32, 1
      %p211 = por %p209, %p210
      %p213 = scmp.ne.s32.totalorder %s196, %s212
      %p214 = scmp.eq.s32.totalorder %s32, 0
      %p215 = por %p213, %p214
      %s216 = ssub.s32 %s26, %s33
      %p217 = scmp.eq.s32.totalorder %s216, 0
      %s219 = sadd.s32 %s218, 1
      %s220 = scalar_select %p217, %s218, %s219
      %p223 = pneg %p217
      %p224 = scmp.eq.s32.totalorder %s26, 1
      %p225 = por %p223, %p224
      %p226 = scmp.ne.s32.totalorder %s218, %s221
      %p227 = scmp.eq.s32.totalorder %s26, 0
      %p228 = por %p226, %p227
      %p229 = scmp.ne.s32.totalorder %s218, %s221
      %p230 = scmp.eq.s32.totalorder %s31, 1
      %p231 = por %p229, %p230
      %p232 = scmp.ne.s32.totalorder %s221, %s222
      %p233 = scmp.eq.s32.totalorder %s31, 0
      %p234 = por %p232, %p233
      %p235 = scmp.ne.s32.totalorder %s221, %s222
      %p236 = scmp.eq.s32.totalorder %s32, 1
      %p237 = por %p235, %p236
      %p239 = scmp.ne.s32.totalorder %s222, %s238
      %p240 = scmp.eq.s32.totalorder %s32, 0
      %p241 = por %p239, %p240
      %s242 = ssub.s32 %s26, %s33
      %p243 = scmp.eq.s32.totalorder %s242, 0
      %s245 = sadd.s32 %s244, 1
      %s246 = scalar_select %p243, %s244, %s245
      %p249 = pneg %p243
      %p250 = scmp.eq.s32.totalorder %s26, 1
      %p251 = por %p249, %p250
      %p252 = scmp.ne.s32.totalorder %s244, %s247
      %p253 = scmp.eq.s32.totalorder %s26, 0
      %p254 = por %p252, %p253
      %p255 = scmp.ne.s32.totalorder %s244, %s247
      %p256 = scmp.eq.s32.totalorder %s31, 1
      %p257 = por %p255, %p256
      %p258 = scmp.ne.s32.totalorder %s247, %s248
      %p259 = scmp.eq.s32.totalorder %s31, 0
      %p260 = por %p258, %p259
      %p261 = scmp.ne.s32.totalorder %s247, %s248
      %p262 = scmp.eq.s32.totalorder %s32, 1
      %p263 = por %p261, %p262
      %p265 = scmp.ne.s32.totalorder %s248, %s264
      %p266 = scmp.eq.s32.totalorder %s32, 0
      %p267 = por %p265, %p266
      %s268 = ssub.s32 %s26, %s33
      %p269 = scmp.eq.s32.totalorder %s268, 0
      %s271 = sadd.s32 %s270, 1
      %s272 = scalar_select %p269, %s270, %s271
      %p275 = pneg %p269
      %p276 = scmp.eq.s32.totalorder %s26, 1
      %p277 = por %p275, %p276
      %p278 = scmp.ne.s32.totalorder %s270, %s273
      %p279 = scmp.eq.s32.totalorder %s26, 0
      %p280 = por %p278, %p279
      %p281 = scmp.ne.s32.totalorder %s270, %s273
      %p282 = scmp.eq.s32.totalorder %s31, 1
      %p283 = por %p281, %p282
      %p284 = scmp.ne.s32.totalorder %s273, %s274
      %p285 = scmp.eq.s32.totalorder %s31, 0
      %p286 = por %p284, %p285
      %p287 = scmp.ne.s32.totalorder %s273, %s274
      %p288 = scmp.eq.s32.totalorder %s32, 1
      %p289 = por %p287, %p288
      %p291 = scmp.ne.s32.totalorder %s274, %s290
      %p292 = scmp.eq.s32.totalorder %s32, 0
      %p293 = por %p291, %p292
      %s294 = ssub.s32 %s26, %s33
      %p295 = scmp.eq.s32.totalorder %s294, 0
      %s297 = sadd.s32 %s296, 1
      %s298 = scalar_select %p295, %s296, %s297
      %p301 = pneg %p295
      %p302 = scmp.eq.s32.totalorder %s26, 1
      %p303 = por %p301, %p302
      %p304 = scmp.ne.s32.totalorder %s296, %s299
      %p305 = scmp.eq.s32.totalorder %s26, 0
      %p306 = por %p304, %p305
      %p307 = scmp.ne.s32.totalorder %s296, %s299
      %p308 = scmp.eq.s32.totalorder %s31, 1
      %p309 = por %p307, %p308
      %p310 = scmp.ne.s32.totalorder %s299, %s300
      %p311 = scmp.eq.s32.totalorder %s31, 0
      %p312 = por %p310, %p311
      %p313 = scmp.ne.s32.totalorder %s299, %s300
      %p314 = scmp.eq.s32.totalorder %s32, 1
      %p315 = por %p313, %p314
      %p317 = scmp.ne.s32.totalorder %s300, %s316
      %p318 = scmp.eq.s32.totalorder %s32, 0
      %p319 = por %p317, %p318
      %p320 = scmp.le.s32.totalorder 1, %s26
      %p321 = scmp.lt.s32.totalorder %s26, 3
      %p322 = pnand %p320, %p321
      %p323 = pneg %p322
      // Predicated region
      $region9: #{tpu_custom_call.1} parent=5 // pred_check
        _
      $region10: #{tpu_custom_call.1} parent=5 // pred_check_branch
        %325 = sbr.rel (%p322) target = $region12
      $region11: #{tpu_custom_call.1} parent=5 // pred_region
        %s326 = ssub.s32 %s26, 1
      $region12: #{tpu_custom_call.1} parent=5 // pred_fallthru
        _
      %p327 = scmp.lt.s32.totalorder %s26, 2
      // Predicated region
      $region13: #{tpu_custom_call.1} parent=5 // pred_check
        %p328 = pneg %p327
      $region14: #{tpu_custom_call.1} parent=5 // pred_check_branch
        %330 = sbr.rel (%p328) target = $region16
      $region15: #{tpu_custom_call.1} parent=5 // pred_region
        // Predicated region
        $region17: #{tpu_custom_call.1} parent=15 // pred_check
          %p331 = pneg %p46
        $region18: #{tpu_custom_call.1} parent=15 // pred_check_branch
          %333 = sbr.rel (%p331) target = $region20
        $region19: #{tpu_custom_call.1} parent=15 // pred_region
          %p334 = scmp.lt.s32.totalorder %s26, 1
          %s335 = scalar_select %p334, %s26, 1
          %s336 = smul.addr %s335, 2
          %s337 = smul.addr %s336, 8
          %s338 = scalar_lea.vmem %s0, %s337
        $region20: #{tpu_custom_call.1} parent=15 // pred_fallthru
          _
        // Predicated region
        $region21: #{tpu_custom_call.1} parent=15 // pred_check
          %p339 = pneg %p72
        $region22: #{tpu_custom_call.1} parent=15 // pred_check_branch
          %341 = sbr.rel (%p339) target = $region24
        $region23: #{tpu_custom_call.1} parent=15 // pred_region
          %p342 = scmp.lt.s32.totalorder %s26, 1
          %s343 = scalar_select %p342, %s26, 1
          %s344 = smul.addr %s343, 2
          %s345 = smul.addr %s344, 8
          %s346 = scalar_lea.vmem %s1, %s345
        $region24: #{tpu_custom_call.1} parent=15 // pred_fallthru
          _
        // Predicated region
        $region25: #{tpu_custom_call.1} parent=15 // pred_check
          %p347 = pneg %p98
        $region26: #{tpu_custom_call.1} parent=15 // pred_check_branch
          %349 = sbr.rel (%p347) target = $region28
        $region27: #{tpu_custom_call.1} parent=15 // pred_region
          %p350 = scmp.lt.s32.totalorder %s26, 1
          %s351 = scalar_select %p350, %s26, 1
          %s352 = scalar_lea.vmem %s2, %s351
        $region28: #{tpu_custom_call.1} parent=15 // pred_fallthru
          _
        // Predicated region
        $region29: #{tpu_custom_call.1} parent=15 // pred_check
          %p353 = pneg %p124
        $region30: #{tpu_custom_call.1} parent=15 // pred_check_branch
          %355 = sbr.rel (%p353) target = $region32
        $region31: #{tpu_custom_call.1} parent=15 // pred_region
          %p356 = scmp.lt.s32.totalorder %s26, 1
          %s357 = scalar_select %p356, %s26, 1
          %s358 = scalar_lea.vmem %s3, %s357
        $region32: #{tpu_custom_call.1} parent=15 // pred_fallthru
          _
        // Predicated region
        $region33: #{tpu_custom_call.1} parent=15 // pred_check
          %p359 = pneg %p150
        $region34: #{tpu_custom_call.1} parent=15 // pred_check_branch
          %361 = sbr.rel (%p359) target = $region36
        $region35: #{tpu_custom_call.1} parent=15 // pred_region
          %p362 = scmp.lt.s32.totalorder %s26, 1
          %s363 = scalar_select %p362, %s26, 1
          %s364 = scalar_lea.vmem %s4, %s363
        $region36: #{tpu_custom_call.1} parent=15 // pred_fallthru
          _
        // Predicated region
        $region37: #{tpu_custom_call.1} parent=15 // pred_check
          %p365 = pneg %p176
        $region38: #{tpu_custom_call.1} parent=15 // pred_check_branch
          %367 = sbr.rel (%p365) target = $region40
        $region39: #{tpu_custom_call.1} parent=15 // pred_region
          %p368 = scmp.lt.s32.totalorder %s26, 1
          %s369 = scalar_select %p368, %s26, 1
          %s370 = smul.addr %s369, 4
          %s371 = smul.addr %s370, 8
          %s372 = scalar_lea.vmem %s5, %s371
        $region40: #{tpu_custom_call.1} parent=15 // pred_fallthru
          _
        // Predicated region
        $region41: #{tpu_custom_call.1} parent=15 // pred_check
          %p373 = pneg %p202
        $region42: #{tpu_custom_call.1} parent=15 // pred_check_branch
          %375 = sbr.rel (%p373) target = $region44
        $region43: #{tpu_custom_call.1} parent=15 // pred_region
          %p376 = scmp.lt.s32.totalorder %s26, 1
          %s377 = scalar_select %p376, %s26, 1
          %s378 = scalar_lea.vmem %s6, %s377
        $region44: #{tpu_custom_call.1} parent=15 // pred_fallthru
          _
      $region16: #{tpu_custom_call.1} parent=5 // pred_fallthru
        _
      %p379 = scmp.le.s32.totalorder 1, %s26
      %p380 = scmp.lt.s32.totalorder %s26, 3
      %p381 = pnand %p379, %p380
      %p382 = pneg %p381
      // Predicated region
      $region45: #{tpu_custom_call.1} parent=5 // pred_check
        _
      $region46: #{tpu_custom_call.1} parent=5 // pred_check_branch
        %384 = sbr.rel (%p381) target = $region48
      $region47: #{tpu_custom_call.1} parent=5 // pred_region
        %s385 = ssub.s32 %s26, 1
        %p386 = scmp.lt.s32.totalorder %s31, 1
        %s387 = scalar_select %p386, %s31, 1
        %s388 = smul.addr %s387, 2
        %s389 = smul.addr %s388, 8
        %s390 = scalar_lea.vmem %s0, %s389
        %p391 = pneg %p52
        %p392 = pneg %p49
        %p393 = scmp.lt.s32.totalorder %s31, 1
        %s394 = scalar_select %p393, %s31, 1
        %s395 = smul.addr %s394, 2
        %s396 = smul.addr %s395, 8
        %s397 = scalar_lea.vmem %s1, %s396
        %p398 = pneg %p78
        %p399 = pneg %p75
        %p400 = scmp.lt.s32.totalorder %s31, 1
        %s401 = scalar_select %p400, %s31, 1
        %s402 = scalar_lea.vmem %s2, %s401
        %p403 = pneg %p104
        %p404 = pneg %p101
        %p405 = scmp.lt.s32.totalorder %s31, 1
        %s406 = scalar_select %p405, %s31, 1
        %s407 = scalar_lea.vmem %s3, %s406
        %p408 = pneg %p130
        %p409 = pneg %p127
        %p410 = scmp.lt.s32.totalorder %s31, 1
        %s411 = scalar_select %p410, %s31, 1
        %s412 = scalar_lea.vmem %s4, %s411
        %p413 = pneg %p156
        %p414 = pneg %p153
        %p415 = scmp.lt.s32.totalorder %s31, 1
        %s416 = scalar_select %p415, %s31, 1
        %s417 = smul.addr %s416, 4
        %s418 = smul.addr %s417, 8
        %s419 = scalar_lea.vmem %s5, %s418
        %p420 = pneg %p182
        %p421 = pneg %p179
        %p422 = scmp.lt.s32.totalorder %s31, 1
        %s423 = scalar_select %p422, %s31, 1
        %s424 = scalar_lea.vmem %s6, %s423
        %p425 = pneg %p208
        %p426 = pneg %p205
        %p427 = pneg %p234
        %p428 = pneg %p231
        %s429 = sand.u32 %s221, 1
        %s430 = scalar_lea.sflag [#allocation3], %s429
        %s431 = sand.u32 %s221, 1
        %s432 = smul.addr %s431, 16
        %s433 = scalar_lea.vmem [#allocation2], %s432
        %p434 = pneg %p260
        %p435 = pneg %p257
        %s436 = sand.u32 %s31, 1
        %s437 = scalar_lea.sflag [#allocation5], %s436
        %s438 = sand.u32 %s247, 1
        %s439 = smul.addr %s438, 16
        %s440 = scalar_lea.vmem [#allocation4], %s439
        %p441 = pneg %p286
        %p442 = pneg %p283
        %s443 = sand.u32 %s31, 1
        %s444 = scalar_lea.sflag [#allocation5], %s443
        %s445 = sand.u32 %s273, 1
        %s446 = smul.addr %s445, 16
        %s447 = scalar_lea.vmem [#allocation6], %s446
        %p448 = pneg %p312
        %p449 = pneg %p309
        %s450 = sand.u32 %s299, 1
        %s451 = scalar_lea.sflag [#allocation8], %s450
        %s452 = sand.u32 %s299, 1
        %s453 = smul.addr %s452, 16
        %s454 = scalar_lea.vmem [#allocation7], %s453
        %p455 = scmp.lt.s32.totalorder %s31, 1
        %s456 = scalar_select %p455, %s31, 1
        %s457 = smul.addr %s456, 2
        %s458 = smul.addr %s457, 8
        %s459 = scalar_lea.vmem %s0, %s458
        %p460 = scmp.lt.s32.totalorder %s31, 1
        %s461 = scalar_select %p460, %s31, 1
        %s462 = smul.addr %s461, 2
        %s463 = smul.addr %s462, 8
        %s464 = scalar_lea.vmem %s1, %s463
        %p465 = scmp.lt.s32.totalorder %s31, 1
        %s466 = scalar_select %p465, %s31, 1
        %s467 = scalar_lea.vmem %s2, %s466
        %p468 = scmp.lt.s32.totalorder %s31, 1
        %s469 = scalar_select %p468, %s31, 1
        %s470 = scalar_lea.vmem %s3, %s469
        %p471 = scmp.lt.s32.totalorder %s31, 1
        %s472 = scalar_select %p471, %s31, 1
        %s473 = scalar_lea.vmem %s4, %s472
        %p474 = scmp.lt.s32.totalorder %s31, 1
        %s475 = scalar_select %p474, %s31, 1
        %s476 = smul.addr %s475, 4
        %s477 = smul.addr %s476, 8
        %s478 = scalar_lea.vmem %s5, %s477
        %p479 = scmp.lt.s32.totalorder %s31, 1
        %s480 = scalar_select %p479, %s31, 1
        %s481 = scalar_lea.vmem %s6, %s480
        %v482 = vld [vmem:[%s459] sm:$0xff]
        %v483 = vld [vmem:[%s459 + $0x8] sm:$0xff]
        %v484 = vld [vmem:[%s464] sm:$0xff]
        %v485 = vld [vmem:[%s464 + $0x8] sm:$0xf]
        %v486 = vld [vmem:[%s467] sm:$0x1]
        %v488 = vlaneseq
        %v489 = vshrl.u32 %v488, 7
        %v490 = vsub.s32 0, %v489
        %v491 = vrot.slane %v486, %v490
        %vm493 = vcmask 97280
        %v495 = vsel %vm493, %v482, 0
        %v498 = vsel %vm493, %v483, 0
        %vm500 = vcmask 1043456
        %v502 = vsel %vm500, %v485, 0
        %504 = vmatprep.subr.mxu0 0.0
        %505 = vmatpush1.msra.mxu0 %v484
        %506 = vmatprep.subr.mxu0 0.0
        %507 = vmatpush1.msra.mxu0 %v502
        %508 = vmatprep.subr.mxu0 0.0
        %509 = vmatpush1.msra.mxu0 0.0
        %510 = vmatprep.subr.mxu0 0.0
        %511 = vmatpush1.msra.mxu0 0.0
        %512 = vmatprep.subr.mxu0 0.0
        %513 = vmatpush1.msra.mxu0 0.0
        %514 = vmatprep.subr.mxu0 0.0
        %515 = vmatpush1.msra.mxu0 0.0
        %516 = vmatprep.subr.mxu0 0.0
        %517 = vmatpush1.msra.mxu0 0.0
        %518 = vmatprep.subr.mxu0 0.0
        %519 = vmatpush1.msra.mxu0 0.0
        %520 = vmatprep.subr.mxu0 0.0
        %521 = vmatpush1.msra.mxu0 0.0
        %522 = vmatprep.subr.mxu0 0.0
        %523 = vmatpush1.msra.mxu0 0.0
        %524 = vmatprep.subr.mxu0 0.0
        %525 = vmatpush1.msra.mxu0 0.0
        %526 = vmatprep.subr.mxu0 0.0
        %527 = vmatpush1.msra.mxu0 0.0
        %528 = vmatprep.subr.mxu0 0.0
        %529 = vmatpush1.msra.mxu0 0.0
        %530 = vmatprep.subr.mxu0 0.0
        %531 = vmatpush1.msra.mxu0 0.0
        %532 = vmatprep.subr.mxu0 0.0
        %533 = vmatpush1.msra.mxu0 0.0
        %534 = vmatprep.subr.mxu0 0.0
        %535 = vmatpush1.msra.mxu0 0.0
        %536 = vmatprep.subr.mxu0 0.0
        %537 = vmatpush1.msra.mxu0 0.0
        %538 = vmatprep.subr.mxu0 0.0
        %539 = vmatpush1.msra.mxu0 0.0
        %540 = vmatprep.subr.mxu0 0.0
        %541 = vmatpush1.msra.mxu0 0.0
        %542 = vmatprep.subr.mxu0 0.0
        %543 = vmatpush1.msra.mxu0 0.0
        %544 = vmatprep.subr.mxu0 0.0
        %545 = vmatpush1.msra.mxu0 0.0
        %546 = vmatprep.subr.mxu0 0.0
        %547 = vmatpush1.msra.mxu0 0.0
        %548 = vmatprep.subr.mxu0 0.0
        %549 = vmatpush1.msra.mxu0 0.0
        %550 = vmatprep.subr.mxu0 0.0
        %551 = vmatpush1.msra.mxu0 0.0
        %552 = vmatprep.subr.mxu0 0.0
        %553 = vmatpush1.msra.mxu0 0.0
        %554 = vmatprep.subr.mxu0 0.0
        %555 = vmatpush1.msra.mxu0 0.0
        %556 = vmatprep.subr.mxu0 0.0
        %557 = vmatpush1.msra.mxu0 0.0
        %558 = vmatprep.subr.mxu0 0.0
        %559 = vmatpush1.msra.mxu0 0.0
        %560 = vmatprep.subr.mxu0 0.0
        %561 = vmatpush1.msra.mxu0 0.0
        %562 = vmatprep.subr.mxu0 0.0
        %563 = vmatpush1.msra.mxu0 0.0
        %564 = vmatprep.subr.mxu0 0.0
        %565 = vmatpush1.msra.mxu0 0.0
        %566 = vmatprep.subr.mxu0 0.0
        %567 = vmatpush1.msra.mxu0 0.0
        %568 = vmatprep.mubr.f32.mxu0 0.0
        %569 = vmatmul.mubr.f32.gmra.mrb[0].mxu0 %v495
        %v570 = vpop.f32.mrb[0].mxu0
        %v571 = vadd.f32 %v491, %v570
        %v572 = vpop.f32.mrb[0].mxu0
        %573 = vmatprep.mubr.f32.mxu0 0.0
        %574 = vmatmul.mubr.f32.gmra.mrb[0].mxu0 %v498
        %v575 = vpop.f32.mrb[0].mxu0
        %v576 = vadd.f32 %v491, %v575
        %v577 = vpop.f32.mrb[0].mxu0
        %578 = vdwg.mxu0
        %v579 = vld [vmem:[%s470] sm:$0x1]
        %v580 = vld [vmem:[%s473] sm:$0x1]
        %vm581 = vcmask 261120
        %v582 = vsel %vm581, %v571, 0.0
        %583 = vadd.xlane.f32.xlu0 %v582
        %v584 = vpop.xlane.xlu0 %583
        %v585 = vsel %vm581, %v576, 0.0
        %586 = vadd.xlane.f32.xlu0 %v585
        %v587 = vpop.xlane.xlu0 %586
        %v588 = vrcp.pop 32.0
        %v589 = vmul.f32 %v584, %v588
        %v590 = vmul.f32 %v587, %v588
        %v591 = vsub.f32 %v571, %v589
        %v592 = vsub.f32 %v576, %v590
        %v593 = vmul.f32 %v591, %v591
        %v594 = vmul.f32 %v592, %v592
        %v595 = vsel %vm581, %v593, 0.0
        %596 = vadd.xlane.f32.xlu0 %v595
        %v597 = vpop.xlane.xlu0 %596
        %v598 = vsel %vm581, %v594, 0.0
        %599 = vadd.xlane.f32.xlu0 %v598
        %v600 = vpop.xlane.xlu0 %599
        %v601 = vmul.f32 %v597, %v588
        %v602 = vmul.f32 %v600, %v588
        %v603 = vadd.f32 %v601, 1e-05
        %v604 = vadd.f32 %v602, 1e-05
        %v605 = vrsqrt.pop %v603
        %v606 = vrsqrt.pop %v604
        %v607 = vmul.f32 %v591, %v605
        %v608 = vmul.f32 %v592, %v606
        %v610 = vlaneseq
        %v611 = vshrl.u32 %v610, 7
        %v612 = vsub.s32 0, %v611
        %v613 = vrot.slane %v579, %v612
        %v615 = vmul.f32 %v607, %v613
        %v616 = vmul.f32 %v608, %v613
        %v618 = vlaneseq
        %v619 = vshrl.u32 %v618, 7
        %v620 = vsub.s32 0, %v619
        %v621 = vrot.slane %v580, %v620
        %v623 = vadd.f32 %v615, %v621
        %v624 = vadd.f32 %v616, %v621
        %v625 = vmax.f32 %v623, 0.0
        %v626 = vmax.f32 %v624, 0.0
        %627 = vst.msk [vmem:[%s433] sm:$0xff] %vm581, %v625
        %628 = vst.msk [vmem:[%s433 + $0x8] sm:$0xff] %vm581, %v626
        %v629 = vld [vmem:[%s478] sm:$0xff]
        %v630 = vld [vmem:[%s478 + $0x8] sm:$0xff]
        %v631 = vld [vmem:[%s478 + $0x10] sm:$0xff]
        %v632 = vld [vmem:[%s478 + $0x18] sm:$0xff]
        %v633 = vld [vmem:[%s481] sm:$0x1]
        %v635 = vlaneseq
        %v636 = vshrl.u32 %v635, 7
        %v637 = vsub.s32 0, %v636
        %v638 = vrot.slane %v633, %v637
        %v641 = vsel %vm581, %v625, 0
        %v644 = vsel %vm581, %v626, 0
        %646 = vmatprep.subr.mxu0 0.0
        %647 = vmatpush1.msra.mxu0 %v629
        %648 = vmatprep.subr.mxu0 0.0
        %649 = vmatpush1.msra.mxu0 %v630
        %650 = vmatprep.subr.mxu0 0.0
        %651 = vmatpush1.msra.mxu0 %v631
        %652 = vmatprep.subr.mxu0 0.0
        %653 = vmatpush1.msra.mxu0 %v632
        %654 = vmatprep.subr.mxu0 0.0
        %655 = vmatpush1.msra.mxu0 0.0
        %656 = vmatprep.subr.mxu0 0.0
        %657 = vmatpush1.msra.mxu0 0.0
        %658 = vmatprep.subr.mxu0 0.0
        %659 = vmatpush1.msra.mxu0 0.0
        %660 = vmatprep.subr.mxu0 0.0
        %661 = vmatpush1.msra.mxu0 0.0
        %662 = vmatprep.subr.mxu0 0.0
        %663 = vmatpush1.msra.mxu0 0.0
        %664 = vmatprep.subr.mxu0 0.0
        %665 = vmatpush1.msra.mxu0 0.0
        %666 = vmatprep.subr.mxu0 0.0
        %667 = vmatpush1.msra.mxu0 0.0
        %668 = vmatprep.subr.mxu0 0.0
        %669 = vmatpush1.msra.mxu0 0.0
        %670 = vmatprep.subr.mxu0 0.0
        %671 = vmatpush1.msra.mxu0 0.0
        %672 = vmatprep.subr.mxu0 0.0
        %673 = vmatpush1.msra.mxu0 0.0
        %674 = vmatprep.subr.mxu0 0.0
        %675 = vmatpush1.msra.mxu0 0.0
        %676 = vmatprep.subr.mxu0 0.0
        %677 = vmatpush1.msra.mxu0 0.0
        %678 = vmatprep.subr.mxu0 0.0
        %679 = vmatpush1.msra.mxu0 0.0
        %680 = vmatprep.subr.mxu0 0.0
        %681 = vmatpush1.msra.mxu0 0.0
        %682 = vmatprep.subr.mxu0 0.0
        %683 = vmatpush1.msra.mxu0 0.0
        %684 = vmatprep.subr.mxu0 0.0
        %685 = vmatpush1.msra.mxu0 0.0
        %686 = vmatprep.subr.mxu0 0.0
        %687 = vmatpush1.msra.mxu0 0.0
        %688 = vmatprep.subr.mxu0 0.0
        %689 = vmatpush1.msra.mxu0 0.0
        %690 = vmatprep.subr.mxu0 0.0
        %691 = vmatpush1.msra.mxu0 0.0
        %692 = vmatprep.subr.mxu0 0.0
        %693 = vmatpush1.msra.mxu0 0.0
        %694 = vmatprep.subr.mxu0 0.0
        %695 = vmatpush1.msra.mxu0 0.0
        %696 = vmatprep.subr.mxu0 0.0
        %697 = vmatpush1.msra.mxu0 0.0
        %698 = vmatprep.subr.mxu0 0.0
        %699 = vmatpush1.msra.mxu0 0.0
        %700 = vmatprep.subr.mxu0 0.0
        %701 = vmatpush1.msra.mxu0 0.0
        %702 = vmatprep.subr.mxu0 0.0
        %703 = vmatpush1.msra.mxu0 0.0
        %704 = vmatprep.subr.mxu0 0.0
        %705 = vmatpush1.msra.mxu0 0.0
        %706 = vmatprep.subr.mxu0 0.0
        %707 = vmatpush1.msra.mxu0 0.0
        %708 = vmatprep.subr.mxu0 0.0
        %709 = vmatpush1.msra.mxu0 0.0
        %710 = vmatprep.mubr.f32.mxu0 0.0
        %711 = vmatmul.mubr.f32.gmra.mrb[0].mxu0 %v641
        %v712 = vpop.f32.mrb[0].mxu0
        %v713 = vadd.f32 %v638, %v712
        %v714 = vpop.f32.mrb[0].mxu0
        %715 = vmatprep.mubr.f32.mxu0 0.0
        %716 = vmatmul.mubr.f32.gmra.mrb[0].mxu0 %v644
        %v717 = vpop.f32.mrb[0].mxu0
        %v718 = vadd.f32 %v638, %v717
        %v719 = vpop.f32.mrb[0].mxu0
        %720 = vdwg.mxu0
        %721 = vst.msk [vmem:[%s440] sm:$0xff] %vm581, %v713
        %722 = vst.msk [vmem:[%s440 + $0x8] sm:$0xff] %vm581, %v718
        %725 = vrot.lane.b32.xlu0 %v713, 96
        %v726 = vpop.permute.xlu0 %725
        %727 = vrot.lane.b32.xlu0 %v718, 96
        %v728 = vpop.permute.xlu0 %727
        %731 = vst.msk [vmem:[%s447] sm:$0xff] %vm581, %v726
        %732 = vst.msk [vmem:[%s447 + $0x8] sm:$0xff] %vm581, %v728
        %733 = vrot.lane.b32.xlu0 %v713, 64
        %v734 = vpop.permute.xlu0 %733
        %735 = vrot.lane.b32.xlu0 %v718, 64
        %v736 = vpop.permute.xlu0 %735
        %739 = vst.msk [vmem:[%s454] sm:$0xff] %vm581, %v734
        %740 = vst.msk [vmem:[%s454 + $0x8] sm:$0xff] %vm581, %v736
        %s741 = sand.u32 %s221, 1
        %s742 = scalar_lea.sflag [#allocation3], %s741
        %s743 = sand.u32 %s221, 1
        %s744 = smul.addr %s743, 16
        %s745 = scalar_lea.vmem [#allocation2], %s744
        %s746 = sand.u32 %s31, 1
        %s747 = scalar_lea.sflag [#allocation5], %s746
        %s748 = sand.u32 %s247, 1
        %s749 = smul.addr %s748, 16
        %s750 = scalar_lea.vmem [#allocation4], %s749
        %s751 = sand.u32 %s31, 1
        %s752 = scalar_lea.sflag [#allocation5], %s751
        %s753 = sand.u32 %s273, 1
        %s754 = smul.addr %s753, 16
        %s755 = scalar_lea.vmem [#allocation6], %s754
        %s756 = sand.u32 %s299, 1
        %s757 = scalar_lea.sflag [#allocation8], %s756
        %s758 = sand.u32 %s299, 1
        %s759 = smul.addr %s758, 16
        %s760 = scalar_lea.vmem [#allocation7], %s759
        // Predicated region
        $region49: #{tpu_custom_call.1} parent=47 // pred_check
          %p761 = pneg %p231
        $region50: #{tpu_custom_call.1} parent=47 // pred_check_branch
          %763 = sbr.rel (%p761) target = $region52
        $region51: #{tpu_custom_call.1} parent=47 // pred_region
          %s765 = ssub.s32 256, 256
          %766 = vsyncadd %s742, %s765
          %s767 = smul.addr %s31, 2
          %s768 = smul.addr %s767, 128
          %s769 = scalar_lea.hbm %s7, %s768
          %s770 = sshll.u32 %s745, 4
          %s771 = int_to_ptr.vmem [resolvable:$true] %s770
          %776 = dma.vmem_to_hbm [thread:$0]  %s771, 256, %s769, %s742, 128, 128, 8
        $region52: #{tpu_custom_call.1} parent=47 // pred_fallthru
          _
        // Predicated region
        $region53: #{tpu_custom_call.1} parent=47 // pred_check
          %p777 = pneg %p257
        $region54: #{tpu_custom_call.1} parent=47 // pred_check_branch
          %779 = sbr.rel (%p777) target = $region56
        $region55: #{tpu_custom_call.1} parent=47 // pred_region
          %s781 = ssub.s32 256, 256
          %782 = vsyncadd %s747, %s781
          %s783 = smul.addr %s31, 2
          %s784 = smul.addr %s783, 128
          %s785 = scalar_lea.hbm %s8, %s784
          %s786 = sshll.u32 %s750, 4
          %s787 = int_to_ptr.vmem [resolvable:$true] %s786
          %792 = dma.vmem_to_hbm [thread:$0]  %s787, 256, %s785, %s747, 128, 128, 8
        $region56: #{tpu_custom_call.1} parent=47 // pred_fallthru
          _
        // Predicated region
        $region57: #{tpu_custom_call.1} parent=47 // pred_check
          %p793 = pneg %p283
        $region58: #{tpu_custom_call.1} parent=47 // pred_check_branch
          %795 = sbr.rel (%p793) target = $region60
        $region59: #{tpu_custom_call.1} parent=47 // pred_region
          %s797 = ssub.s32 256, 256
          %798 = vsyncadd %s752, %s797
          %s799 = smul.addr %s31, 2
          %s800 = smul.addr %s799, 128
          %s801 = scalar_lea.hbm %s9, %s800
          %s802 = sshll.u32 %s755, 4
          %s803 = int_to_ptr.vmem [resolvable:$true] %s802
          %808 = dma.vmem_to_hbm [thread:$0]  %s803, 256, %s801, %s752, 128, 128, 8
        $region60: #{tpu_custom_call.1} parent=47 // pred_fallthru
          _
        // Predicated region
        $region61: #{tpu_custom_call.1} parent=47 // pred_check
          %p809 = pneg %p309
        $region62: #{tpu_custom_call.1} parent=47 // pred_check_branch
          %811 = sbr.rel (%p809) target = $region64
        $region63: #{tpu_custom_call.1} parent=47 // pred_region
          %s813 = ssub.s32 256, 256
          %814 = vsyncadd %s757, %s813
          %s815 = smul.addr %s31, 2
          %s816 = smul.addr %s815, 128
          %s817 = scalar_lea.hbm %s10, %s816
          %s818 = sshll.u32 %s760, 4
          %s819 = int_to_ptr.vmem [resolvable:$true] %s818
          %824 = dma.vmem_to_hbm [thread:$0]  %s819, 256, %s817, %s757, 128, 128, 8
        $region64: #{tpu_custom_call.1} parent=47 // pred_fallthru
          _
      $region48: #{tpu_custom_call.1} parent=5 // pred_fallthru
        _
      %p825 = scmp.le.s32.totalorder 2, %s26
      // Predicated region
      $region65: #{tpu_custom_call.1} parent=5 // pred_check
        %p826 = pneg %p825
      $region66: #{tpu_custom_call.1} parent=5 // pred_check_branch
        %828 = sbr.rel (%p826) target = $region68
      $region67: #{tpu_custom_call.1} parent=5 // pred_region
        %s829 = ssub.s32 %s26, 2
        // Predicated region
        $region69: #{tpu_custom_call.1} parent=67 // pred_check
          %p830 = pneg %p237
        $region70: #{tpu_custom_call.1} parent=67 // pred_check_branch
          %832 = sbr.rel (%p830) target = $region72
        $region71: #{tpu_custom_call.1} parent=67 // pred_region
          %s833 = sand.u32 %s222, 1
          %s834 = scalar_lea.sflag [#allocation3], %s833
          %s835 = sand.u32 %s222, 1
          %s836 = smul.addr %s835, 16
          %s837 = scalar_lea.vmem [#allocation2], %s836
          %838 = dma.done %s834, 256
        $region72: #{tpu_custom_call.1} parent=67 // pred_fallthru
          _
        // Predicated region
        $region73: #{tpu_custom_call.1} parent=67 // pred_check
          %p839 = pneg %p263
        $region74: #{tpu_custom_call.1} parent=67 // pred_check_branch
          %841 = sbr.rel (%p839) target = $region76
        $region75: #{tpu_custom_call.1} parent=67 // pred_region
          %s842 = sand.u32 %s32, 1
          %s843 = scalar_lea.sflag [#allocation5], %s842
          %s844 = sand.u32 %s248, 1
          %s845 = smul.addr %s844, 16
          %s846 = scalar_lea.vmem [#allocation4], %s845
          %847 = dma.done %s843, 256
        $region76: #{tpu_custom_call.1} parent=67 // pred_fallthru
          _
        // Predicated region
        $region77: #{tpu_custom_call.1} parent=67 // pred_check
          %p848 = pneg %p289
        $region78: #{tpu_custom_call.1} parent=67 // pred_check_branch
          %850 = sbr.rel (%p848) target = $region80
        $region79: #{tpu_custom_call.1} parent=67 // pred_region
          %s851 = sand.u32 %s32, 1
          %s852 = scalar_lea.sflag [#allocation5], %s851
          %s853 = sand.u32 %s274, 1
          %s854 = smul.addr %s853, 16
          %s855 = scalar_lea.vmem [#allocation6], %s854
          %856 = dma.done %s852, 256
        $region80: #{tpu_custom_call.1} parent=67 // pred_fallthru
          _
        // Predicated region
        $region81: #{tpu_custom_call.1} parent=67 // pred_check
          %p857 = pneg %p315
        $region82: #{tpu_custom_call.1} parent=67 // pred_check_branch
          %859 = sbr.rel (%p857) target = $region84
        $region83: #{tpu_custom_call.1} parent=67 // pred_region
          %s860 = sand.u32 %s300, 1
          %s861 = scalar_lea.sflag [#allocation8], %s860
          %s862 = sand.u32 %s300, 1
          %s863 = smul.addr %s862, 16
          %s864 = scalar_lea.vmem [#allocation7], %s863
          %865 = dma.done %s861, 256
        $region84: #{tpu_custom_call.1} parent=67 // pred_fallthru
          _
      $region68: #{tpu_custom_call.1} parent=5 // pred_fallthru
        _
    $region6: #{tpu_custom_call.1} parent=1 // loop_footer
      %s30 = sadd.s32 1, %s26
    $region7: #{tpu_custom_call.1} parent=1 // loop_footer_branch
      %25 = sbr.rel target = $region3
    $region8: #{tpu_custom_call.1} parent=1 // loop_exit
      _
    %866 = vsyncpa [#allocation3], 1
    %s867 = scalar_lea.sflag [#allocation3], 1
    %868 = vsyncpa %s867, 1
    %869 = vsyncpa [#allocation5], 1
    %s870 = scalar_lea.sflag [#allocation5], 1
    %871 = vsyncpa %s870, 1
    %872 = vsyncpa [#allocation8], 1
    %s873 = scalar_lea.sflag [#allocation8], 1
    %874 = vsyncpa %s873, 1

</llo_original>
